<compile_context>
chip_gen: v6e
topology: v6e:2x2x1
jax: 0.10.0
libtpu: 0.0.40
codegen_flags: <defaults>
</compile_context>

<pallas_src>
import functools

import jax
import jax.numpy as jnp
from jax.experimental import pallas as pl
from jax.experimental.pallas import tpu as pltpu

EPS = 1e-5


# --------------------------------------------------------------------------- #
# Kernels
# --------------------------------------------------------------------------- #
def _conv1x1_bn_single_kernel(x_ref, w_ref, g_ref, b_ref, o_ref, *, m):
    """Single-block path (whole M fits one VMEM tile) -- used for the module's
    production shape M = N*H*W = 49, which is latency/overhead dominated."""
    # 1x1 conv == matmul on the MXU; bf16 operands, f32 accumulation.
    y = jnp.dot(w_ref[...], x_ref[...].astype(jnp.bfloat16),
                preferred_element_type=jnp.float32)                 # (C_out, M)

    # BatchNorm2d training-mode statistics over the full M extent (per channel).
    inv_m = jnp.float32(1.0 / m)
    mean = jnp.sum(y, axis=1, keepdims=True) * inv_m                 # (C_out, 1)
    centered = y - mean
    var = jnp.sum(centered * centered, axis=1, keepdims=True) * inv_m  # biased
    inv_std = jax.lax.rsqrt(var + EPS)                               # EUP

    scale = g_ref[...] * inv_std                                     # (C_out, 1)
    o_ref[...] = (centered * scale + b_ref[...]).astype(o_ref.dtype)


def _conv1x1_bn_tiled_kernel(x_ref, w_ref, g_ref, b_ref, o_ref,
                             mean_ref, m2_ref, *, m, tile_m, rem, grid_m):
    """Tiled path for large M.

    x tiles are auto-pipelined by BlockSpec.  Each conv-output tile is written
    directly into the resident full-width o_ref (no duplicate VMEM scratch) and
    per-channel partial statistics (running mean + centered M2, Chan's parallel
    variance combine) are accumulated during the HBM-bound per-tile steps.  The
    last grid step only computes scale/shift and normalizes o_ref in place with
    a fori_loop over 128-aligned slices (remainder handled once, statically).

    NOTE: this grid axis carries the BN reduction + resident output, so it must
    be "arbitrary".  Edge-tile columns >= rem are BlockSpec padding garbage and
    are excluded from every reduction and store.
    """
    t = pl.program_id(0)
    n_full = grid_m if rem == 0 else grid_m - 1

    @pl.when(t == 0)
    def _init():
        mean_ref[...] = jnp.zeros_like(mean_ref)
        m2_ref[...] = jnp.zeros_like(m2_ref)

    # 1x1 conv tile on the MXU (bf16 operands, f32 accumulate).
    y = jnp.dot(w_ref[...], x_ref[...].astype(jnp.bfloat16),
                preferred_element_type=jnp.float32)                  # (C_out, tile_m)

    def _combine(y_tile, n_prev_f32, m_t):
        # Chan's parallel-variance combine of one tile into (mean_ref, m2_ref).
        m_t_f = jnp.float32(m_t)
        tile_mean = jnp.sum(y_tile, axis=1, keepdims=True) / m_t_f
        centered = y_tile - tile_mean
        tile_m2 = jnp.sum(centered * centered, axis=1, keepdims=True)
        delta = tile_mean - mean_ref[...]
        new_n = n_prev_f32 + m_t_f
        mean_ref[...] = mean_ref[...] + delta * (m_t_f / new_n)
        m2_ref[...] = m2_ref[...] + tile_m2 + (delta * delta) * (n_prev_f32 * m_t_f / new_n)

    if rem == 0:
        lo = pl.multiple_of(t * tile_m, 128)
        o_ref[:, pl.ds(lo, tile_m)] = y.astype(o_ref.dtype)
        _combine(y, (t * tile_m).astype(jnp.float32), tile_m)
    else:
        @pl.when(t < n_full)
        def _full_tile():
            lo = pl.multiple_of(t * tile_m, 128)
            o_ref[:, pl.ds(lo, tile_m)] = y.astype(o_ref.dtype)
            _combine(y, (t * tile_m).astype(jnp.float32), tile_m)

        @pl.when(t == grid_m - 1)
        def _edge_tile():
            # Last tile is a partial edge block: columns >= rem are padding.
            lo_last = (grid_m - 1) * tile_m                          # static
            y_edge = y[:, :rem]
            o_ref[:, lo_last:lo_last + rem] = y_edge.astype(o_ref.dtype)
            _combine(y_edge, jnp.float32((grid_m - 1) * tile_m), rem)

    @pl.when(t == grid_m - 1)
    def _finalize():
        mean = mean_ref[...]
        var = m2_ref[...] * jnp.float32(1.0 / m)                     # biased
        inv_std = jax.lax.rsqrt(var + EPS)                           # EUP
        scale = g_ref[...] * inv_std
        shift = b_ref[...] - mean * scale

        def body(i, carry):
            lo = pl.multiple_of(i * tile_m, 128)
            sl = pl.ds(lo, tile_m)
            o_ref[:, sl] = (o_ref[:, sl] * scale + shift).astype(o_ref.dtype)
            return carry

        jax.lax.fori_loop(0, n_full, body, 0)

        if rem != 0:
            lo_last = (grid_m - 1) * tile_m                          # static
            o_ref[:, lo_last:lo_last + rem] = (
                o_ref[:, lo_last:lo_last + rem] * scale + shift
            ).astype(o_ref.dtype)


# --------------------------------------------------------------------------- #
# Wrapper
# --------------------------------------------------------------------------- #
def _default_tile_m_max():
    # v7x: 64 MiB VMEM but 3.2 TB/s HBM -> wider tiles amortize per-step overhead.
    try:
        kind = jax.devices()[0].device_kind.lower()
    except Exception:
        kind = ""
    return 2048 if "v7" in kind else 1024


def conv1x1_bn(x_nchw, w_oi, gamma, beta, *, tile_m_max=None, out_dtype=jnp.float32):
    """Forward of Conv2d(704->128, 1x1, bias=False) + BatchNorm2d(128) (training mode).

    x_nchw: (N, C_in, H, W) f32;  w_oi: (C_out, C_in) (1x1 conv weight squeezed);
    gamma/beta: (C_out,).  Returns NCHW in `out_dtype` (default f32; pass bf16
    if the consumer accepts it -- halves resident output VMEM + output HBM traffic).
    """
    n, c_in, h, w = x_nchw.shape
    c_out = w_oi.shape[0]
    m = n * h * w
    if tile_m_max is None:
        tile_m_max = _default_tile_m_max()

    # ---- layout: (C_out, M) orientation => no HBM transposes for N == 1 ----
    if n == 1:
        x_cm = x_nchw.reshape(c_in, m)                               # pure reshape
    else:
        # TODO(synk): for N > 1 this transpose is a real HBM op; fold it into the
        # kernel's index_map if that case ever matters.
        x_cm = jnp.transpose(x_nchw.reshape(n, c_in, h * w), (1, 0, 2)).reshape(c_in, m)

    # bf16 MXU operands (f32 accumulation + f32 BN math inside the kernel).
    w_bf16 = w_oi.astype(jnp.bfloat16)                               # tiny -> wrapper cast
    g2 = gamma.reshape(c_out, 1).astype(jnp.float32)
    b2 = beta.reshape(c_out, 1).astype(jnp.float32)

    if m <= tile_m_max:
        tile_m, grid_m, rem = m, 1, 0
    else:
        tile_m = tile_m_max                                          # multiple of 128
        grid_m = pl.cdiv(m, tile_m)
        rem = m % tile_m

    out_itemsize = jnp.dtype(out_dtype).itemsize

    if grid_m == 1:
        kernel = functools.partial(_conv1x1_bn_single_kernel, m=m)
        scratch_shapes = []
        vmem_limit = None                                            # default is plenty
    else:
        kernel = functools.partial(_conv1x1_bn_tiled_kernel,
                                   m=m, tile_m=tile_m, rem=rem, grid_m=grid_m)
        scratch_shapes = [
            pltpu.VMEM((c_out, 1), jnp.float32),                     # running mean
            pltpu.VMEM((c_out, 1), jnp.float32),                     # running centered M2
        ]
        # Explicit scoped-VMEM budget (defaults: 16 MiB v5e / 32 MiB v6e,v7x):
        # double-buffered f32 x tiles + resident output (budget 2 buffers) +
        # bf16 weight + small scalars, with headroom.
        vmem_needed = (
            2 * c_in * tile_m * 4
            + 2 * c_out * m * out_itemsize
            + 2 * c_out * c_in * 2
            + 16 * c_out * 4
        )
        vmem_limit = int(vmem_needed * 1.25) + (2 << 20)
        vmem_limit = max(vmem_limit, 32 << 20)
        vmem_limit = min(vmem_limit, 100 << 20)

    cost = pl.CostEstimate(
        flops=2 * m * c_in * c_out + 10 * m * c_out,
        transcendentals=c_out,
        bytes_accessed=(m * c_in * 4 + c_in * c_out * 2 + 2 * c_out * 4
                        + m * c_out * out_itemsize),
    )

    y_cm = pl.pallas_call(
        kernel,
        out_shape=jax.ShapeDtypeStruct((c_out, m), out_dtype),
        grid_spec=pltpu.PrefetchScalarGridSpec(
            num_scalar_prefetch=0,
            grid=(grid_m,),
            in_specs=[
                pl.BlockSpec((c_in, tile_m), lambda t: (0, t)),      # pipelined x tiles
                pl.BlockSpec((c_out, c_in), lambda t: (0, 0)),       # resident weight
                pl.BlockSpec((c_out, 1), lambda t: (0, 0)),          # gamma
                pl.BlockSpec((c_out, 1), lambda t: (0, 0)),          # beta
            ],
            out_specs=pl.BlockSpec((c_out, m), lambda t: (0, 0)),    # resident output
            scratch_shapes=scratch_shapes,
        ),
        compiler_params=pltpu.CompilerParams(
            # Grid axis carries the BN reduction / resident output -> arbitrary.
            dimension_semantics=("arbitrary",),
            vmem_limit_bytes=vmem_limit,
        ),
        cost_estimate=cost,
    )(x_cm, w_bf16, g2, b2)

    # ---- (C_out, M) -> NCHW (pure reshape for N == 1) ----
    if n == 1:
        return y_cm.reshape(1, c_out, h, w)
    return jnp.transpose(y_cm.reshape(c_out, n, h * w), (1, 0, 2)).reshape(n, c_out, h, w)


# --------------------------------------------------------------------------- #
# Plain-JAX reference (1x1 conv, no bias + training-mode BatchNorm2d)
# --------------------------------------------------------------------------- #
def _reference(x_nchw, w_oi, gamma, beta, *, matmul_dtype):
    y = jnp.einsum("nchw,oc->nohw",
                   x_nchw.astype(matmul_dtype), w_oi.astype(matmul_dtype),
                   preferred_element_type=jnp.float32)
    mean = jnp.mean(y, axis=(0, 2, 3), keepdims=True)
    var = jnp.mean((y - mean) ** 2, axis=(0, 2, 3), keepdims=True)
    g = gamma.reshape(1, -1, 1, 1)
    b = beta.reshape(1, -1, 1, 1)
    return (y - mean) * jax.lax.rsqrt(var + EPS) * g + b


if __name__ == "__main__":
    key = jax.random.PRNGKey(0)
    k_x, k_w, k_g, k_b, k_x2 = jax.random.split(key, 5)

    # ---- the module's shape: (1, 704, 7, 7) -> single-block path (M = 49) ----
    N, C_IN, H, W = 1, 704, 7, 7
    C_OUT = 128

    x = jax.random.normal(k_x, (N, C_IN, H, W), dtype=jnp.float32)
    w_conv = jax.random.normal(k_w, (C_OUT, C_IN), dtype=jnp.float32) * (1.0 / jnp.sqrt(C_IN))
    gamma = 1.0 + 0.1 * jax.random.normal(k_g, (C_OUT,), dtype=jnp.float32)
    beta = 0.1 * jax.random.normal(k_b, (C_OUT,), dtype=jnp.float32)

    out = jax.block_until_ready(conv1x1_bn(x, w_conv, gamma, beta))
    assert out.shape == (N, C_OUT, H, W)

    ref_bf16 = _reference(x, w_conv, gamma, beta, matmul_dtype=jnp.bfloat16)
    assert jnp.allclose(out, ref_bf16, atol=2e-3, rtol=2e-3), "mismatch vs bf16-matmul reference"
    ref_f32 = _reference(x, w_conv, gamma, beta, matmul_dtype=jnp.float32)
    assert jnp.allclose(out, ref_f32, atol=5e-2, rtol=5e-2), "mismatch vs f32 reference"

    # ---- larger spatial extent -> exercises the tiled path (full + edge tile) ----
    H2 = W2 = 37                                                     # M = 1369
    x2 = jax.random.normal(k_x2, (1, C_IN, H2, W2), dtype=jnp.float32)
    out2 = jax.block_until_ready(
        conv1x1_bn(x2, w_conv, gamma, beta, tile_m_max=1024))        # force tiling
    ref2 = _reference(x2, w_conv, gamma, beta, matmul_dtype=jnp.bfloat16)
    assert out2.shape == (1, C_OUT, H2, W2)
    assert jnp.allclose(out2, ref2, atol=2e-3, rtol=2e-3), "tiled-path mismatch"

    print("KERNEL_OK")
</pallas_src>

<mosaic_0001>
module attributes {stable_mosaic.version = 11 : i64} {
  func.func @_conv1x1_bn_single_kernel(%arg0: i32, %arg1: memref<704x49xf32, #tpu.memory_space<vmem>>, %arg2: memref<128x704xbf16, #tpu.memory_space<vmem>>, %arg3: memref<128x1xf32, #tpu.memory_space<vmem>>, %arg4: memref<128x1xf32, #tpu.memory_space<vmem>>, %arg5: memref<128x49xf32, #tpu.memory_space<vmem>>) attributes {dimension_semantics = [#tpu.dimension_semantics<arbitrary>], iteration_bounds = array<i64: 1>, scalar_prefetch = 0 : i64, scratch_operands = 0 : i64, tpu.core_type = #tpu.core_type<tc>, window_params = [{transform_indices = @transform_0, window_bounds = array<i64: 704, 49>}, {pipeline_mode = #tpu.pipeline_mode<synchronous>, transform_indices = @transform_1, window_bounds = array<i64: 128, 704>}, {pipeline_mode = #tpu.pipeline_mode<synchronous>, transform_indices = @transform_2, window_bounds = array<i64: 128, 1>}, {pipeline_mode = #tpu.pipeline_mode<synchronous>, transform_indices = @transform_3, window_bounds = array<i64: 128, 1>}, {pipeline_mode = #tpu.pipeline_mode<synchronous>, transform_indices = @transform_4, window_bounds = array<i64: 128, 49>}]} {
    %c0 = arith.constant 0 : index
    %c0_0 = arith.constant 0 : index
    %0 = vector.load %arg2[%c0, %c0_0] : memref<128x704xbf16, #tpu.memory_space<vmem>>, vector<128x704xbf16>
    %c0_1 = arith.constant 0 : index
    %c0_2 = arith.constant 0 : index
    %1 = vector.load %arg1[%c0_1, %c0_2] : memref<704x49xf32, #tpu.memory_space<vmem>>, vector<704x49xf32>
    %2 = arith.truncf %1 : vector<704x49xf32> to vector<704x49xbf16>
    %cst = arith.constant dense<0.000000e+00> : vector<128x49xf32>
    %3 = tpu.matmul %0, %2, %cst {dimension_numbers = #tpu.dot_dimension_numbers<[1], [0], [0], [1], [0, 0, 1, 1], [], []>} : vector<128x704xbf16>, vector<704x49xbf16>, vector<128x49xf32> -> vector<128x49xf32>
    %cst_3 = arith.constant dense<0.000000e+00> : vector<128xf32>
    %4 = vector.multi_reduction <add>, %3, %cst_3 [1] : vector<128x49xf32> to vector<128xf32>
    %5 = vector.shape_cast %4 : vector<128xf32> to vector<128x1xf32>
    %cst_4 = arith.constant 0.0204081628 : f32
    %6 = vector.broadcast %cst_4 : f32 to vector<128x1xf32>
    %7 = arith.mulf %5, %6 : vector<128x1xf32>
    %8 = vector.broadcast %7 : vector<128x1xf32> to vector<128x49xf32>
    %9 = arith.subf %3, %8 : vector<128x49xf32>
    %10 = arith.mulf %9, %9 : vector<128x49xf32>
    %cst_5 = arith.constant dense<0.000000e+00> : vector<128xf32>
    %11 = vector.multi_reduction <add>, %10, %cst_5 [1] : vector<128x49xf32> to vector<128xf32>
    %12 = vector.shape_cast %11 : vector<128xf32> to vector<128x1xf32>
    %cst_6 = arith.constant 0.0204081628 : f32
    %13 = vector.broadcast %cst_6 : f32 to vector<128x1xf32>
    %14 = arith.mulf %12, %13 : vector<128x1xf32>
    %cst_7 = arith.constant 9.99999974E-6 : f32
    %15 = vector.broadcast %cst_7 : f32 to vector<128x1xf32>
    %16 = arith.addf %14, %15 : vector<128x1xf32>
    %17 = math.rsqrt %16 : vector<128x1xf32>
    %c0_8 = arith.constant 0 : index
    %c0_9 = arith.constant 0 : index
    %18 = vector.load %arg3[%c0_8, %c0_9] : memref<128x1xf32, #tpu.memory_space<vmem>>, vector<128x1xf32>
    %19 = arith.mulf %18, %17 : vector<128x1xf32>
    %20 = vector.broadcast %19 : vector<128x1xf32> to vector<128x49xf32>
    %21 = arith.mulf %9, %20 : vector<128x49xf32>
    %c0_10 = arith.constant 0 : index
    %c0_11 = arith.constant 0 : index
    %22 = vector.load %arg4[%c0_10, %c0_11] : memref<128x1xf32, #tpu.memory_space<vmem>>, vector<128x1xf32>
    %23 = vector.broadcast %22 : vector<128x1xf32> to vector<128x49xf32>
    %24 = arith.addf %21, %23 : vector<128x49xf32>
    %c0_12 = arith.constant 0 : index
    %c0_13 = arith.constant 0 : index
    %25 = vector.load %arg5[%c0_12, %c0_13] : memref<128x49xf32, #tpu.memory_space<vmem>>, vector<128x49xf32>
    tpu.vector_store %arg5[%c0_12, %c0_13], %24 {strides = array<i32>} : memref<128x49xf32, #tpu.memory_space<vmem>>, vector<128x49xf32>,
    return
  }
  func.func @transform_0(%arg0: i32) -> (i32, i32) {
    %c0_i32 = arith.constant 0 : i32
    %c0_i32_0 = arith.constant 0 : i32
    return %c0_i32, %arg0 : i32, i32
  }
  func.func @transform_1(%arg0: i32) -> (i32, i32) {
    %c0_i32 = arith.constant 0 : i32
    %c0_i32_0 = arith.constant 0 : i32
    %c0_i32_1 = arith.constant 0 : i32
    return %c0_i32, %c0_i32_0 : i32, i32
  }
  func.func @transform_2(%arg0: i32) -> (i32, i32) {
    %c0_i32 = arith.constant 0 : i32
    %c0_i32_0 = arith.constant 0 : i32
    %c0_i32_1 = arith.constant 0 : i32
    return %c0_i32, %c0_i32_0 : i32, i32
  }
  func.func @transform_3(%arg0: i32) -> (i32, i32) {
    %c0_i32 = arith.constant 0 : i32
    %c0_i32_0 = arith.constant 0 : i32
    %c0_i32_1 = arith.constant 0 : i32
    return %c0_i32, %c0_i32_0 : i32, i32
  }
  func.func @transform_4(%arg0: i32) -> (i32, i32) {
    %c0_i32 = arith.constant 0 : i32
    %c0_i32_0 = arith.constant 0 : i32
    %c0_i32_1 = arith.constant 0 : i32
    return %c0_i32, %c0_i32_0 : i32, i32
  }
}

</mosaic_0001>

<llo_original>
// kernel: tpu_custom_call.1
$region0: #{tpu_custom_call.1}
  #allocation0 [shape = 'u32[]', space=smem, size = 0x4, offset = 0x4, fixed_abs, tag = 'smem constant byte address 0x4 - core index']
  #allocation1 [shape = 'u32[144,128]{1,0:T(1,128)}', space=vmem, size = 0x12000, scoped, tag = 'internal scratch']
  %s0 = inlined_call_operand.vmem [shape: f32[704,49], index: 0, kind: input, shape index: {}]
  %s1 = inlined_call_operand.vmem [shape: bf16[128,704], index: 1, kind: input, shape index: {}]
  %s2 = inlined_call_operand.vmem [shape: f32[128,1], index: 2, kind: input, shape index: {}]
  %s3 = inlined_call_operand.vmem [shape: f32[128,1], index: 3, kind: input, shape index: {}]
  %s4 = inlined_call_operand.vmem [shape: f32[128,49], index: 4, kind: output, shape index: {}]
  %s5 = sld [smem:[#allocation0]]
  $region26: #{tpu_custom_call.1} parent=0
    _
  %s7 = ssub.s32 1, %s5
  %s8 = scalar_select 0, %s7, %s5
  // Predicated region
  $region2: #{tpu_custom_call.1} parent=0 // pred_check
    _
  $region3: #{tpu_custom_call.1} parent=0 // pred_check_branch
    %10 = sbr.rel (0) target = $region5
  $region4: #{tpu_custom_call.1} parent=0 // pred_region
    _
  $region5: #{tpu_custom_call.1} parent=0 // pred_fallthru
    _
  // Predicated region
  $region6: #{tpu_custom_call.1} parent=0 // pred_check
    _
  $region7: #{tpu_custom_call.1} parent=0 // pred_check_branch
    %12 = sbr.rel (0) target = $region9
  $region8: #{tpu_custom_call.1} parent=0 // pred_region
    _
  $region9: #{tpu_custom_call.1} parent=0 // pred_fallthru
    _
  // Predicated region
  $region10: #{tpu_custom_call.1} parent=0 // pred_check
    _
  $region11: #{tpu_custom_call.1} parent=0 // pred_check_branch
    %14 = sbr.rel (0) target = $region13
  $region12: #{tpu_custom_call.1} parent=0 // pred_region
    _
  $region13: #{tpu_custom_call.1} parent=0 // pred_fallthru
    _
  // Predicated region
  $region14: #{tpu_custom_call.1} parent=0 // pred_check
    _
  $region15: #{tpu_custom_call.1} parent=0 // pred_check_branch
    %16 = sbr.rel (0) target = $region17
  $region16: #{tpu_custom_call.1} parent=0 // pred_region
    _
  $region17: #{tpu_custom_call.1} parent=0 // pred_fallthru
    _
  %v18 = vld [vmem:[%s1] sm:$0xff]
  %v19 = vld [vmem:[%s1 + $0x8] sm:$0xff]
  %v20 = vld [vmem:[%s1 + $0x10] sm:$0xff]
  %v21 = vld [vmem:[%s1 + $0x18] sm:$0xff]
  %v22 = vld [vmem:[%s1 + $0x20] sm:$0xff]
  %v23 = vld [vmem:[%s1 + $0x28] sm:$0xff]
  %v24 = vld [vmem:[%s1 + $0x30] sm:$0xff]
  %v25 = vld [vmem:[%s1 + $0x38] sm:$0xff]
  %v26 = vld [vmem:[%s1 + $0x40] sm:$0xff]
  %v27 = vld [vmem:[%s1 + $0x48] sm:$0xff]
  %v28 = vld [vmem:[%s1 + $0x50] sm:$0xff]
  %v29 = vld [vmem:[%s1 + $0x58] sm:$0xff]
  %v30 = vld [vmem:[%s1 + $0x60] sm:$0xff]
  %v31 = vld [vmem:[%s1 + $0x68] sm:$0xff]
  %v32 = vld [vmem:[%s1 + $0x70] sm:$0xff]
  %v33 = vld [vmem:[%s1 + $0x78] sm:$0xff]
  %v34 = vld [vmem:[%s1 + $0x80] sm:$0xff]
  %v35 = vld [vmem:[%s1 + $0x88] sm:$0xff]
  %v36 = vld [vmem:[%s1 + $0x90] sm:$0xff]
  %v37 = vld [vmem:[%s1 + $0x98] sm:$0xff]
  %v38 = vld [vmem:[%s1 + $0xa0] sm:$0xff]
  %v39 = vld [vmem:[%s1 + $0xa8] sm:$0xff]
  %v40 = vld [vmem:[%s1 + $0xb0] sm:$0xff]
  %v41 = vld [vmem:[%s1 + $0xb8] sm:$0xff]
  %v42 = vld [vmem:[%s1 + $0xc0] sm:$0xff]
  %v43 = vld [vmem:[%s1 + $0xc8] sm:$0xff]
  %v44 = vld [vmem:[%s1 + $0xd0] sm:$0xff]
  %v45 = vld [vmem:[%s1 + $0xd8] sm:$0xff]
  %v46 = vld [vmem:[%s1 + $0xe0] sm:$0xff]
  %v47 = vld [vmem:[%s1 + $0xe8] sm:$0xff]
  %v48 = vld [vmem:[%s1 + $0xf0] sm:$0xff]
  %v49 = vld [vmem:[%s1 + $0xf8] sm:$0xff]
  %v50 = vld [vmem:[%s1 + $0x100] sm:$0xff]
  %v51 = vld [vmem:[%s1 + $0x108] sm:$0xff]
  %v52 = vld [vmem:[%s1 + $0x110] sm:$0xff]
  %v53 = vld [vmem:[%s1 + $0x118] sm:$0xff]
  %v54 = vld [vmem:[%s1 + $0x120] sm:$0xff]
  %v55 = vld [vmem:[%s1 + $0x128] sm:$0xff]
  %v56 = vld [vmem:[%s1 + $0x130] sm:$0xff]
  %v57 = vld [vmem:[%s1 + $0x138] sm:$0xff]
  %v58 = vld [vmem:[%s1 + $0x140] sm:$0xff]
  %v59 = vld [vmem:[%s1 + $0x148] sm:$0xff]
  %v60 = vld [vmem:[%s1 + $0x150] sm:$0xff]
  %v61 = vld [vmem:[%s1 + $0x158] sm:$0xff]
  %v62 = vld [vmem:[%s1 + $0x160] sm:$0xff]
  %v63 = vld [vmem:[%s1 + $0x168] sm:$0xff]
  %v64 = vld [vmem:[%s1 + $0x170] sm:$0xff]
  %v65 = vld [vmem:[%s1 + $0x178] sm:$0xff]
  %v66 = vld [vmem:[%s0] sm:$0xff]
  %v67 = vld [vmem:[%s0 + $0x8] sm:$0xff]
  %v68 = vld [vmem:[%s0 + $0x10] sm:$0xff]
  %v69 = vld [vmem:[%s0 + $0x18] sm:$0xff]
  %v70 = vld [vmem:[%s0 + $0x20] sm:$0xff]
  %v71 = vld [vmem:[%s0 + $0x28] sm:$0xff]
  %v72 = vld [vmem:[%s0 + $0x30] sm:$0xff]
  %v73 = vld [vmem:[%s0 + $0x38] sm:$0xff]
  %v74 = vld [vmem:[%s0 + $0x40] sm:$0xff]
  %v75 = vld [vmem:[%s0 + $0x48] sm:$0xff]
  %v76 = vld [vmem:[%s0 + $0x50] sm:$0xff]
  %v77 = vld [vmem:[%s0 + $0x58] sm:$0xff]
  %v78 = vld [vmem:[%s0 + $0x60] sm:$0xff]
  %v79 = vld [vmem:[%s0 + $0x68] sm:$0xff]
  %v80 = vld [vmem:[%s0 + $0x70] sm:$0xff]
  %v81 = vld [vmem:[%s0 + $0x78] sm:$0xff]
  %v82 = vld [vmem:[%s0 + $0x80] sm:$0xff]
  %v83 = vld [vmem:[%s0 + $0x88] sm:$0xff]
  %v84 = vld [vmem:[%s0 + $0x90] sm:$0xff]
  %v85 = vld [vmem:[%s0 + $0x98] sm:$0xff]
  %v86 = vld [vmem:[%s0 + $0xa0] sm:$0xff]
  %v87 = vld [vmem:[%s0 + $0xa8] sm:$0xff]
  %v88 = vld [vmem:[%s0 + $0xb0] sm:$0xff]
  %v89 = vld [vmem:[%s0 + $0xb8] sm:$0xff]
  %v90 = vld [vmem:[%s0 + $0xc0] sm:$0xff]
  %v91 = vld [vmem:[%s0 + $0xc8] sm:$0xff]
  %v92 = vld [vmem:[%s0 + $0xd0] sm:$0xff]
  %v93 = vld [vmem:[%s0 + $0xd8] sm:$0xff]
  %v94 = vld [vmem:[%s0 + $0xe0] sm:$0xff]
  %v95 = vld [vmem:[%s0 + $0xe8] sm:$0xff]
  %v96 = vld [vmem:[%s0 + $0xf0] sm:$0xff]
  %v97 = vld [vmem:[%s0 + $0xf8] sm:$0xff]
  %v98 = vld [vmem:[%s0 + $0x100] sm:$0xff]
  %v99 = vld [vmem:[%s0 + $0x108] sm:$0xff]
  %v100 = vld [vmem:[%s0 + $0x110] sm:$0xff]
  %v101 = vld [vmem:[%s0 + $0x118] sm:$0xff]
  %v102 = vld [vmem:[%s0 + $0x120] sm:$0xff]
  %v103 = vld [vmem:[%s0 + $0x128] sm:$0xff]
  %v104 = vld [vmem:[%s0 + $0x130] sm:$0xff]
  %v105 = vld [vmem:[%s0 + $0x138] sm:$0xff]
  %v106 = vld [vmem:[%s0 + $0x140] sm:$0xff]
  %v107 = vld [vmem:[%s0 + $0x148] sm:$0xff]
  %v108 = vld [vmem:[%s0 + $0x150] sm:$0xff]
  %v109 = vld [vmem:[%s0 + $0x158] sm:$0xff]
  %v110 = vld [vmem:[%s0 + $0x160] sm:$0xff]
  %v111 = vld [vmem:[%s0 + $0x168] sm:$0xff]
  %v112 = vld [vmem:[%s0 + $0x170] sm:$0xff]
  %v113 = vld [vmem:[%s0 + $0x178] sm:$0xff]
  %v114 = vld [vmem:[%s0 + $0x180] sm:$0xff]
  %v115 = vld [vmem:[%s0 + $0x188] sm:$0xff]
  %v116 = vld [vmem:[%s0 + $0x190] sm:$0xff]
  %v117 = vld [vmem:[%s0 + $0x198] sm:$0xff]
  %v118 = vld [vmem:[%s0 + $0x1a0] sm:$0xff]
  %v119 = vld [vmem:[%s0 + $0x1a8] sm:$0xff]
  %v120 = vld [vmem:[%s0 + $0x1b0] sm:$0xff]
  %v121 = vld [vmem:[%s0 + $0x1b8] sm:$0xff]
  %v122 = vld [vmem:[%s0 + $0x1c0] sm:$0xff]
  %v123 = vld [vmem:[%s0 + $0x1c8] sm:$0xff]
  %v124 = vld [vmem:[%s0 + $0x1d0] sm:$0xff]
  %v125 = vld [vmem:[%s0 + $0x1d8] sm:$0xff]
  %v126 = vld [vmem:[%s0 + $0x1e0] sm:$0xff]
  %v127 = vld [vmem:[%s0 + $0x1e8] sm:$0xff]
  %v128 = vld [vmem:[%s0 + $0x1f0] sm:$0xff]
  %v129 = vld [vmem:[%s0 + $0x1f8] sm:$0xff]
  %v130 = vld [vmem:[%s0 + $0x200] sm:$0xff]
  %v131 = vld [vmem:[%s0 + $0x208] sm:$0xff]
  %v132 = vld [vmem:[%s0 + $0x210] sm:$0xff]
  %v133 = vld [vmem:[%s0 + $0x218] sm:$0xff]
  %v134 = vld [vmem:[%s0 + $0x220] sm:$0xff]
  %v135 = vld [vmem:[%s0 + $0x228] sm:$0xff]
  %v136 = vld [vmem:[%s0 + $0x230] sm:$0xff]
  %v137 = vld [vmem:[%s0 + $0x238] sm:$0xff]
  %v138 = vld [vmem:[%s0 + $0x240] sm:$0xff]
  %v139 = vld [vmem:[%s0 + $0x248] sm:$0xff]
  %v140 = vld [vmem:[%s0 + $0x250] sm:$0xff]
  %v141 = vld [vmem:[%s0 + $0x258] sm:$0xff]
  %v142 = vld [vmem:[%s0 + $0x260] sm:$0xff]
  %v143 = vld [vmem:[%s0 + $0x268] sm:$0xff]
  %v144 = vld [vmem:[%s0 + $0x270] sm:$0xff]
  %v145 = vld [vmem:[%s0 + $0x278] sm:$0xff]
  %v146 = vld [vmem:[%s0 + $0x280] sm:$0xff]
  %v147 = vld [vmem:[%s0 + $0x288] sm:$0xff]
  %v148 = vld [vmem:[%s0 + $0x290] sm:$0xff]
  %v149 = vld [vmem:[%s0 + $0x298] sm:$0xff]
  %v150 = vld [vmem:[%s0 + $0x2a0] sm:$0xff]
  %v151 = vld [vmem:[%s0 + $0x2a8] sm:$0xff]
  %v152 = vld [vmem:[%s0 + $0x2b0] sm:$0xff]
  %v153 = vld [vmem:[%s0 + $0x2b8] sm:$0xff]
  %v154 = vpack.c.bf16 %v67, %v66
  %v155 = vpack.c.bf16 %v69, %v68
  %v156 = vpack.c.bf16 %v71, %v70
  %v157 = vpack.c.bf16 %v73, %v72
  %v158 = vpack.c.bf16 %v75, %v74
  %v159 = vpack.c.bf16 %v77, %v76
  %v160 = vpack.c.bf16 %v79, %v78
  %v161 = vpack.c.bf16 %v81, %v80
  %v162 = vpack.c.bf16 %v83, %v82
  %v163 = vpack.c.bf16 %v85, %v84
  %v164 = vpack.c.bf16 %v87, %v86
  %v165 = vpack.c.bf16 %v89, %v88
  %v166 = vpack.c.bf16 %v91, %v90
  %v167 = vpack.c.bf16 %v93, %v92
  %v168 = vpack.c.bf16 %v95, %v94
  %v169 = vpack.c.bf16 %v97, %v96
  %v170 = vpack.c.bf16 %v99, %v98
  %v171 = vpack.c.bf16 %v101, %v100
  %v172 = vpack.c.bf16 %v103, %v102
  %v173 = vpack.c.bf16 %v105, %v104
  %v174 = vpack.c.bf16 %v107, %v106
  %v175 = vpack.c.bf16 %v109, %v108
  %v176 = vpack.c.bf16 %v111, %v110
  %v177 = vpack.c.bf16 %v113, %v112
  %v178 = vpack.c.bf16 %v115, %v114
  %v179 = vpack.c.bf16 %v117, %v116
  %v180 = vpack.c.bf16 %v119, %v118
  %v181 = vpack.c.bf16 %v121, %v120
  %v182 = vpack.c.bf16 %v123, %v122
  %v183 = vpack.c.bf16 %v125, %v124
  %v184 = vpack.c.bf16 %v127, %v126
  %v185 = vpack.c.bf16 %v129, %v128
  %v186 = vpack.c.bf16 %v131, %v130
  %v187 = vpack.c.bf16 %v133, %v132
  %v188 = vpack.c.bf16 %v135, %v134
  %v189 = vpack.c.bf16 %v137, %v136
  %v190 = vpack.c.bf16 %v139, %v138
  %v191 = vpack.c.bf16 %v141, %v140
  %v192 = vpack.c.bf16 %v143, %v142
  %v193 = vpack.c.bf16 %v145, %v144
  %v194 = vpack.c.bf16 %v147, %v146
  %v195 = vpack.c.bf16 %v149, %v148
  %v196 = vpack.c.bf16 %v151, %v150
  %v197 = vpack.c.bf16 %v153, %v152
  %v246 = vunpack.c.l.b16 %v18
  %v247 = vunpack.c.h.b16 %v18
  %v248 = vunpack.c.l.b16 %v19
  %v249 = vunpack.c.h.b16 %v19
  %v250 = vunpack.c.l.b16 %v20
  %v251 = vunpack.c.h.b16 %v20
  %v252 = vunpack.c.l.b16 %v21
  %v253 = vunpack.c.h.b16 %v21
  %v254 = vunpack.c.l.b16 %v22
  %v255 = vunpack.c.h.b16 %v22
  %v256 = vunpack.c.l.b16 %v23
  %v257 = vunpack.c.h.b16 %v23
  %v258 = vunpack.c.l.b16 %v24
  %v259 = vunpack.c.h.b16 %v24
  %v260 = vunpack.c.l.b16 %v25
  %v261 = vunpack.c.h.b16 %v25
  %v262 = vunpack.c.l.b16 %v26
  %v263 = vunpack.c.h.b16 %v26
  %v264 = vunpack.c.l.b16 %v27
  %v265 = vunpack.c.h.b16 %v27
  %v266 = vunpack.c.l.b16 %v28
  %v267 = vunpack.c.h.b16 %v28
  %v268 = vunpack.c.l.b16 %v29
  %v269 = vunpack.c.h.b16 %v29
  %v270 = vunpack.c.l.b16 %v30
  %v271 = vunpack.c.h.b16 %v30
  %v272 = vunpack.c.l.b16 %v31
  %v273 = vunpack.c.h.b16 %v31
  %v274 = vunpack.c.l.b16 %v32
  %v275 = vunpack.c.h.b16 %v32
  %v276 = vunpack.c.l.b16 %v33
  %v277 = vunpack.c.h.b16 %v33
  %v278 = vunpack.c.l.b16 %v34
  %v279 = vunpack.c.h.b16 %v34
  %v280 = vunpack.c.l.b16 %v35
  %v281 = vunpack.c.h.b16 %v35
  %v282 = vunpack.c.l.b16 %v36
  %v283 = vunpack.c.h.b16 %v36
  %v284 = vunpack.c.l.b16 %v37
  %v285 = vunpack.c.h.b16 %v37
  %v286 = vunpack.c.l.b16 %v38
  %v287 = vunpack.c.h.b16 %v38
  %v288 = vunpack.c.l.b16 %v39
  %v289 = vunpack.c.h.b16 %v39
  %v290 = vunpack.c.l.b16 %v40
  %v291 = vunpack.c.h.b16 %v40
  %v292 = vunpack.c.l.b16 %v41
  %v293 = vunpack.c.h.b16 %v41
  %v294 = vunpack.c.l.b16 %v42
  %v295 = vunpack.c.h.b16 %v42
  %v296 = vunpack.c.l.b16 %v43
  %v297 = vunpack.c.h.b16 %v43
  %v298 = vunpack.c.l.b16 %v44
  %v299 = vunpack.c.h.b16 %v44
  %v300 = vunpack.c.l.b16 %v45
  %v301 = vunpack.c.h.b16 %v45
  %v302 = vunpack.c.l.b16 %v46
  %v303 = vunpack.c.h.b16 %v46
  %v304 = vunpack.c.l.b16 %v47
  %v305 = vunpack.c.h.b16 %v47
  %v306 = vunpack.c.l.b16 %v48
  %v307 = vunpack.c.h.b16 %v48
  %v308 = vunpack.c.l.b16 %v49
  %v309 = vunpack.c.h.b16 %v49
  %v310 = vunpack.c.l.b16 %v50
  %v311 = vunpack.c.h.b16 %v50
  %v312 = vunpack.c.l.b16 %v51
  %v313 = vunpack.c.h.b16 %v51
  %v314 = vunpack.c.l.b16 %v52
  %v315 = vunpack.c.h.b16 %v52
  %v316 = vunpack.c.l.b16 %v53
  %v317 = vunpack.c.h.b16 %v53
  %v318 = vunpack.c.l.b16 %v54
  %v319 = vunpack.c.h.b16 %v54
  %v320 = vunpack.c.l.b16 %v55
  %v321 = vunpack.c.h.b16 %v55
  %v322 = vunpack.c.l.b16 %v56
  %v323 = vunpack.c.h.b16 %v56
  %v324 = vunpack.c.l.b16 %v57
  %v325 = vunpack.c.h.b16 %v57
  %v326 = vunpack.c.l.b16 %v58
  %v327 = vunpack.c.h.b16 %v58
  %v328 = vunpack.c.l.b16 %v59
  %v329 = vunpack.c.h.b16 %v59
  %v330 = vunpack.c.l.b16 %v60
  %v331 = vunpack.c.h.b16 %v60
  %v332 = vunpack.c.l.b16 %v61
  %v333 = vunpack.c.h.b16 %v61
  %v334 = vunpack.c.l.b16 %v62
  %v335 = vunpack.c.h.b16 %v62
  %v336 = vunpack.c.l.b16 %v63
  %v337 = vunpack.c.h.b16 %v63
  %v338 = vunpack.c.l.b16 %v64
  %v339 = vunpack.c.h.b16 %v64
  %v340 = vunpack.c.l.b16 %v65
  %v341 = vunpack.c.h.b16 %v65
  %v342 = vpack.c.b16 %v252, %v246
  %v343 = vpack.c.b16 %v253, %v247
  %v344 = vpack.c.b16 %v254, %v248
  %v345 = vpack.c.b16 %v255, %v249
  %v346 = vpack.c.b16 %v256, %v250
  %v347 = vpack.c.b16 %v257, %v251
  %v348 = vpack.c.b16 %v264, %v258
  %v349 = vpack.c.b16 %v265, %v259
  %v350 = vpack.c.b16 %v266, %v260
  %v351 = vpack.c.b16 %v267, %v261
  %v352 = vpack.c.b16 %v268, %v262
  %v353 = vpack.c.b16 %v269, %v263
  %v354 = vpack.c.b16 %v276, %v270
  %v355 = vpack.c.b16 %v277, %v271
  %v356 = vpack.c.b16 %v278, %v272
  %v357 = vpack.c.b16 %v279, %v273
  %v358 = vpack.c.b16 %v280, %v274
  %v359 = vpack.c.b16 %v281, %v275
  %v360 = vpack.c.b16 %v288, %v282
  %v361 = vpack.c.b16 %v289, %v283
  %v362 = vpack.c.b16 %v290, %v284
  %v363 = vpack.c.b16 %v291, %v285
  %v364 = vpack.c.b16 %v292, %v286
  %v365 = vpack.c.b16 %v293, %v287
  %v366 = vpack.c.b16 %v300, %v294
  %v367 = vpack.c.b16 %v301, %v295
  %v368 = vpack.c.b16 %v302, %v296
  %v369 = vpack.c.b16 %v303, %v297
  %v370 = vpack.c.b16 %v304, %v298
  %v371 = vpack.c.b16 %v305, %v299
  %v372 = vpack.c.b16 %v312, %v306
  %v373 = vpack.c.b16 %v313, %v307
  %v374 = vpack.c.b16 %v314, %v308
  %v375 = vpack.c.b16 %v315, %v309
  %v376 = vpack.c.b16 %v316, %v310
  %v377 = vpack.c.b16 %v317, %v311
  %v378 = vpack.c.b16 %v324, %v318
  %v379 = vpack.c.b16 %v325, %v319
  %v380 = vpack.c.b16 %v326, %v320
  %v381 = vpack.c.b16 %v327, %v321
  %v382 = vpack.c.b16 %v328, %v322
  %v383 = vpack.c.b16 %v329, %v323
  %v384 = vpack.c.b16 %v336, %v330
  %v385 = vpack.c.b16 %v337, %v331
  %v386 = vpack.c.b16 %v338, %v332
  %v387 = vpack.c.b16 %v339, %v333
  %v388 = vpack.c.b16 %v340, %v334
  %v389 = vpack.c.b16 %v341, %v335
  %vm430 = vcmask 523264
  %v432 = vsel %vm430, %v347, 0
  %v435 = vsel %vm430, %v353, 0
  %v438 = vsel %vm430, %v359, 0
  %v441 = vsel %vm430, %v365, 0
  %v444 = vsel %vm430, %v371, 0
  %v447 = vsel %vm430, %v377, 0
  %v450 = vsel %vm430, %v383, 0
  %v453 = vsel %vm430, %v389, 0
  %455 = vmatprep.subr.bf16.mxu0 0
  %456 = vmatpush1.bf16.msra.mxu0 %v161
  %457 = vmatprep.subr.bf16.mxu0 0
  %458 = vmatpush1.bf16.msra.mxu0 %v160
  %459 = vmatprep.subr.bf16.mxu0 0
  %460 = vmatpush1.bf16.msra.mxu0 %v159
  %461 = vmatprep.subr.bf16.mxu0 0
  %462 = vmatpush1.bf16.msra.mxu0 %v158
  %463 = vmatprep.subr.bf16.mxu0 0
  %464 = vmatpush1.bf16.msra.mxu0 %v157
  %465 = vmatprep.subr.bf16.mxu0 0
  %466 = vmatpush1.bf16.msra.mxu0 %v156
  %467 = vmatprep.subr.bf16.mxu0 0
  %468 = vmatpush1.bf16.msra.mxu0 %v155
  %469 = vmatprep.subr.bf16.mxu0 0
  %470 = vmatpush1.bf16.msra.mxu0 %v154
  %471 = vmatprep.subr.bf16.mxu0 0
  %472 = vmatpush2.bf16.msra.mxu0 %v169
  %473 = vmatprep.subr.bf16.mxu0 0
  %474 = vmatpush2.bf16.msra.mxu0 %v168
  %475 = vmatprep.subr.bf16.mxu0 0
  %476 = vmatpush2.bf16.msra.mxu0 %v167
  %477 = vmatprep.subr.bf16.mxu0 0
  %478 = vmatpush2.bf16.msra.mxu0 %v166
  %479 = vmatprep.subr.bf16.mxu0 0
  %480 = vmatpush2.bf16.msra.mxu0 %v165
  %481 = vmatprep.subr.bf16.mxu0 0
  %482 = vmatpush2.bf16.msra.mxu0 %v164
  %483 = vmatprep.subr.bf16.mxu0 0
  %484 = vmatpush2.bf16.msra.mxu0 %v163
  %485 = vmatprep.subr.bf16.mxu0 0
  %486 = vmatpush2.bf16.msra.mxu0 %v162
  %487 = vmatprep.mubr.bf16.mxu0 %v343
  %488 = vmatmul.mubr.bf16.gmra.mxu0 %v342
  %v489 = vpop.f32.mrf.mxu0
  %v490 = vadd.f32 0.0, %v489
  %v491 = vpop.f32.mrf.mxu0
  %v492 = vpop.f32.mrf.mxu0
  %v493 = vadd.f32 0.0, %v492
  %v494 = vpop.f32.mrf.mxu0
  %495 = vmatprep.mubr.bf16.mxu0 %v349
  %496 = vmatmul.mubr.bf16.gmra.mxu0 %v348
  %v497 = vpop.f32.mrf.mxu0
  %v498 = vadd.f32 0.0, %v497
  %v499 = vpop.f32.mrf.mxu0
  %v500 = vpop.f32.mrf.mxu0
  %v501 = vadd.f32 0.0, %v500
  %v502 = vpop.f32.mrf.mxu0
  %503 = vmatprep.mubr.bf16.mxu0 %v355
  %504 = vmatmul.mubr.bf16.gmra.mxu0 %v354
  %v505 = vpop.f32.mrf.mxu0
  %v506 = vadd.f32 0.0, %v505
  %v507 = vpop.f32.mrf.mxu0
  %v508 = vpop.f32.mrf.mxu0
  %v509 = vadd.f32 0.0, %v508
  %v510 = vpop.f32.mrf.mxu0
  %511 = vmatprep.mubr.bf16.mxu0 %v361
  %512 = vmatmul.mubr.bf16.gmra.mxu0 %v360
  %v513 = vpop.f32.mrf.mxu0
  %v514 = vadd.f32 0.0, %v513
  %v515 = vpop.f32.mrf.mxu0
  %v516 = vpop.f32.mrf.mxu0
  %v517 = vadd.f32 0.0, %v516
  %v518 = vpop.f32.mrf.mxu0
  %519 = vmatprep.mubr.bf16.mxu0 %v367
  %520 = vmatmul.mubr.bf16.gmra.mxu0 %v366
  %v521 = vpop.f32.mrf.mxu0
  %v522 = vadd.f32 0.0, %v521
  %v523 = vpop.f32.mrf.mxu0
  %v524 = vpop.f32.mrf.mxu0
  %v525 = vadd.f32 0.0, %v524
  %v526 = vpop.f32.mrf.mxu0
  %527 = vmatprep.mubr.bf16.mxu0 %v373
  %528 = vmatmul.mubr.bf16.gmra.mxu0 %v372
  %v529 = vpop.f32.mrf.mxu0
  %v530 = vadd.f32 0.0, %v529
  %v531 = vpop.f32.mrf.mxu0
  %v532 = vpop.f32.mrf.mxu0
  %v533 = vadd.f32 0.0, %v532
  %v534 = vpop.f32.mrf.mxu0
  %535 = vmatprep.mubr.bf16.mxu0 %v379
  %536 = vmatmul.mubr.bf16.gmra.mxu0 %v378
  %v537 = vpop.f32.mrf.mxu0
  %v538 = vadd.f32 0.0, %v537
  %v539 = vpop.f32.mrf.mxu0
  %v540 = vpop.f32.mrf.mxu0
  %v541 = vadd.f32 0.0, %v540
  %v542 = vpop.f32.mrf.mxu0
  %543 = vmatprep.mubr.bf16.mxu0 %v385
  %544 = vmatmul.mubr.bf16.gmra.mxu0 %v384
  %v545 = vpop.f32.mrf.mxu0
  %v546 = vadd.f32 0.0, %v545
  %v547 = vpop.f32.mrf.mxu0
  %v548 = vpop.f32.mrf.mxu0
  %v549 = vadd.f32 0.0, %v548
  %v550 = vpop.f32.mrf.mxu0
  %551 = vdwg.mxu0
  %552 = vmatprep.subr.bf16.mxu0 0
  %553 = vmatpush1.bf16.msra.mxu0 %v177
  %554 = vmatprep.subr.bf16.mxu0 0
  %555 = vmatpush1.bf16.msra.mxu0 %v176
  %556 = vmatprep.subr.bf16.mxu0 0
  %557 = vmatpush1.bf16.msra.mxu0 %v175
  %558 = vmatprep.subr.bf16.mxu0 0
  %559 = vmatpush1.bf16.msra.mxu0 %v174
  %560 = vmatprep.subr.bf16.mxu0 0
  %561 = vmatpush1.bf16.msra.mxu0 %v173
  %562 = vmatprep.subr.bf16.mxu0 0
  %563 = vmatpush1.bf16.msra.mxu0 %v172
  %564 = vmatprep.subr.bf16.mxu0 0
  %565 = vmatpush1.bf16.msra.mxu0 %v171
  %566 = vmatprep.subr.bf16.mxu0 0
  %567 = vmatpush1.bf16.msra.mxu0 %v170
  %568 = vmatprep.subr.bf16.mxu0 0
  %569 = vmatpush2.bf16.msra.mxu0 %v185
  %570 = vmatprep.subr.bf16.mxu0 0
  %571 = vmatpush2.bf16.msra.mxu0 %v184
  %572 = vmatprep.subr.bf16.mxu0 0
  %573 = vmatpush2.bf16.msra.mxu0 %v183
  %574 = vmatprep.subr.bf16.mxu0 0
  %575 = vmatpush2.bf16.msra.mxu0 %v182
  %576 = vmatprep.subr.bf16.mxu0 0
  %577 = vmatpush2.bf16.msra.mxu0 %v181
  %578 = vmatprep.subr.bf16.mxu0 0
  %579 = vmatpush2.bf16.msra.mxu0 %v180
  %580 = vmatprep.subr.bf16.mxu0 0
  %581 = vmatpush2.bf16.msra.mxu0 %v179
  %582 = vmatprep.subr.bf16.mxu0 0
  %583 = vmatpush2.bf16.msra.mxu0 %v178
  %584 = vmatprep.mubr.bf16.mxu0 %v345
  %585 = vmatmul.mubr.bf16.gmra.mxu0 %v344
  %v586 = vpop.f32.mrf.mxu0
  %v587 = vadd.f32 %v490, %v586
  %v588 = vpop.f32.mrf.mxu0
  %v589 = vpop.f32.mrf.mxu0
  %v590 = vadd.f32 %v493, %v589
  %v591 = vpop.f32.mrf.mxu0
  %592 = vmatprep.mubr.bf16.mxu0 %v351
  %593 = vmatmul.mubr.bf16.gmra.mxu0 %v350
  %v594 = vpop.f32.mrf.mxu0
  %v595 = vadd.f32 %v498, %v594
  %v596 = vpop.f32.mrf.mxu0
  %v597 = vpop.f32.mrf.mxu0
  %v598 = vadd.f32 %v501, %v597
  %v599 = vpop.f32.mrf.mxu0
  %600 = vmatprep.mubr.bf16.mxu0 %v357
  %601 = vmatmul.mubr.bf16.gmra.mxu0 %v356
  %v602 = vpop.f32.mrf.mxu0
  %v603 = vadd.f32 %v506, %v602
  %v604 = vpop.f32.mrf.mxu0
  %v605 = vpop.f32.mrf.mxu0
  %v606 = vadd.f32 %v509, %v605
  %v607 = vpop.f32.mrf.mxu0
  %608 = vmatprep.mubr.bf16.mxu0 %v363
  %609 = vmatmul.mubr.bf16.gmra.mxu0 %v362
  %v610 = vpop.f32.mrf.mxu0
  %v611 = vadd.f32 %v514, %v610
  %v612 = vpop.f32.mrf.mxu0
  %v613 = vpop.f32.mrf.mxu0
  %v614 = vadd.f32 %v517, %v613
  %v615 = vpop.f32.mrf.mxu0
  %616 = vmatprep.mubr.bf16.mxu0 %v369
  %617 = vmatmul.mubr.bf16.gmra.mxu0 %v368
  %v618 = vpop.f32.mrf.mxu0
  %v619 = vadd.f32 %v522, %v618
  %v620 = vpop.f32.mrf.mxu0
  %v621 = vpop.f32.mrf.mxu0
  %v622 = vadd.f32 %v525, %v621
  %v623 = vpop.f32.mrf.mxu0
  %624 = vmatprep.mubr.bf16.mxu0 %v375
  %625 = vmatmul.mubr.bf16.gmra.mxu0 %v374
  %v626 = vpop.f32.mrf.mxu0
  %v627 = vadd.f32 %v530, %v626
  %v628 = vpop.f32.mrf.mxu0
  %v629 = vpop.f32.mrf.mxu0
  %v630 = vadd.f32 %v533, %v629
  %v631 = vpop.f32.mrf.mxu0
  %632 = vmatprep.mubr.bf16.mxu0 %v381
  %633 = vmatmul.mubr.bf16.gmra.mxu0 %v380
  %v634 = vpop.f32.mrf.mxu0
  %v635 = vadd.f32 %v538, %v634
  %v636 = vpop.f32.mrf.mxu0
  %v637 = vpop.f32.mrf.mxu0
  %v638 = vadd.f32 %v541, %v637
  %v639 = vpop.f32.mrf.mxu0
  %640 = vmatprep.mubr.bf16.mxu0 %v387
  %641 = vmatmul.mubr.bf16.gmra.mxu0 %v386
  %v642 = vpop.f32.mrf.mxu0
  %v643 = vadd.f32 %v546, %v642
  %v644 = vpop.f32.mrf.mxu0
  %v645 = vpop.f32.mrf.mxu0
  %v646 = vadd.f32 %v549, %v645
  %v647 = vpop.f32.mrf.mxu0
  %648 = vdwg.mxu0
  %649 = vmatprep.subr.bf16.mxu0 0
  %650 = vmatpush1.bf16.msra.mxu0 %v193
  %651 = vmatprep.subr.bf16.mxu0 0
  %652 = vmatpush1.bf16.msra.mxu0 %v192
  %653 = vmatprep.subr.bf16.mxu0 0
  %654 = vmatpush1.bf16.msra.mxu0 %v191
  %655 = vmatprep.subr.bf16.mxu0 0
  %656 = vmatpush1.bf16.msra.mxu0 %v190
  %657 = vmatprep.subr.bf16.mxu0 0
  %658 = vmatpush1.bf16.msra.mxu0 %v189
  %659 = vmatprep.subr.bf16.mxu0 0
  %660 = vmatpush1.bf16.msra.mxu0 %v188
  %661 = vmatprep.subr.bf16.mxu0 0
  %662 = vmatpush1.bf16.msra.mxu0 %v187
  %663 = vmatprep.subr.bf16.mxu0 0
  %664 = vmatpush1.bf16.msra.mxu0 %v186
  %665 = vmatprep.subr.bf16.mxu0 0
  %666 = vmatpush2.bf16.msra.mxu0 0
  %667 = vmatprep.subr.bf16.mxu0 0
  %668 = vmatpush2.bf16.msra.mxu0 0
  %669 = vmatprep.subr.bf16.mxu0 0
  %670 = vmatpush2.bf16.msra.mxu0 0
  %671 = vmatprep.subr.bf16.mxu0 0
  %672 = vmatpush2.bf16.msra.mxu0 0
  %673 = vmatprep.subr.bf16.mxu0 0
  %674 = vmatpush2.bf16.msra.mxu0 %v197
  %675 = vmatprep.subr.bf16.mxu0 0
  %676 = vmatpush2.bf16.msra.mxu0 %v196
  %677 = vmatprep.subr.bf16.mxu0 0
  %678 = vmatpush2.bf16.msra.mxu0 %v195
  %679 = vmatprep.subr.bf16.mxu0 0
  %680 = vmatpush2.bf16.msra.mxu0 %v194
  %681 = vmatprep.mubr.bf16.mxu0 %v432
  %682 = vmatmul.mubr.bf16.gmra.mxu0 %v346
  %v683 = vpop.f32.mrf.mxu0
  %v684 = vadd.f32 %v587, %v683
  %v685 = vpop.f32.mrf.mxu0
  %v686 = vpop.f32.mrf.mxu0
  %v687 = vadd.f32 %v590, %v686
  %v688 = vpop.f32.mrf.mxu0
  %689 = vmatprep.mubr.bf16.mxu0 %v435
  %690 = vmatmul.mubr.bf16.gmra.mxu0 %v352
  %v691 = vpop.f32.mrf.mxu0
  %v692 = vadd.f32 %v595, %v691
  %v693 = vpop.f32.mrf.mxu0
  %v694 = vpop.f32.mrf.mxu0
  %v695 = vadd.f32 %v598, %v694
  %v696 = vpop.f32.mrf.mxu0
  %697 = vmatprep.mubr.bf16.mxu0 %v438
  %698 = vmatmul.mubr.bf16.gmra.mxu0 %v358
  %v699 = vpop.f32.mrf.mxu0
  %v700 = vadd.f32 %v603, %v699
  %v701 = vpop.f32.mrf.mxu0
  %v702 = vpop.f32.mrf.mxu0
  %v703 = vadd.f32 %v606, %v702
  %v704 = vpop.f32.mrf.mxu0
  %705 = vmatprep.mubr.bf16.mxu0 %v441
  %706 = vmatmul.mubr.bf16.gmra.mxu0 %v364
  %v707 = vpop.f32.mrf.mxu0
  %v708 = vadd.f32 %v611, %v707
  %v709 = vpop.f32.mrf.mxu0
  %v710 = vpop.f32.mrf.mxu0
  %v711 = vadd.f32 %v614, %v710
  %v712 = vpop.f32.mrf.mxu0
  %713 = vmatprep.mubr.bf16.mxu0 %v444
  %714 = vmatmul.mubr.bf16.gmra.mxu0 %v370
  %v715 = vpop.f32.mrf.mxu0
  %v716 = vadd.f32 %v619, %v715
  %v717 = vpop.f32.mrf.mxu0
  %v718 = vpop.f32.mrf.mxu0
  %v719 = vadd.f32 %v622, %v718
  %v720 = vpop.f32.mrf.mxu0
  %721 = vmatprep.mubr.bf16.mxu0 %v447
  %722 = vmatmul.mubr.bf16.gmra.mxu0 %v376
  %v723 = vpop.f32.mrf.mxu0
  %v724 = vadd.f32 %v627, %v723
  %v725 = vpop.f32.mrf.mxu0
  %v726 = vpop.f32.mrf.mxu0
  %v727 = vadd.f32 %v630, %v726
  %v728 = vpop.f32.mrf.mxu0
  %729 = vmatprep.mubr.bf16.mxu0 %v450
  %730 = vmatmul.mubr.bf16.gmra.mxu0 %v382
  %v731 = vpop.f32.mrf.mxu0
  %v732 = vadd.f32 %v635, %v731
  %v733 = vpop.f32.mrf.mxu0
  %v734 = vpop.f32.mrf.mxu0
  %v735 = vadd.f32 %v638, %v734
  %v736 = vpop.f32.mrf.mxu0
  %737 = vmatprep.mubr.bf16.mxu0 %v453
  %738 = vmatmul.mubr.bf16.gmra.mxu0 %v388
  %v739 = vpop.f32.mrf.mxu0
  %v740 = vadd.f32 %v643, %v739
  %v741 = vpop.f32.mrf.mxu0
  %v742 = vpop.f32.mrf.mxu0
  %v743 = vadd.f32 %v646, %v742
  %v744 = vpop.f32.mrf.mxu0
  %745 = vdwg.mxu0
  %vm746 = vcmask 400384
  %v747 = vsel %vm746, %v684, 0.0
  %748 = vadd.xlane.f32.xlu0 %v747
  %v749 = vpop.xlane.xlu0 %748
  %v750 = vsel %vm746, %v687, 0.0
  %751 = vadd.xlane.f32.xlu0 %v750
  %v752 = vpop.xlane.xlu0 %751
  %v753 = vsel %vm746, %v692, 0.0
  %754 = vadd.xlane.f32.xlu0 %v753
  %v755 = vpop.xlane.xlu0 %754
  %v756 = vsel %vm746, %v695, 0.0
  %757 = vadd.xlane.f32.xlu0 %v756
  %v758 = vpop.xlane.xlu0 %757
  %v759 = vsel %vm746, %v700, 0.0
  %760 = vadd.xlane.f32.xlu0 %v759
  %v761 = vpop.xlane.xlu0 %760
  %v762 = vsel %vm746, %v703, 0.0
  %763 = vadd.xlane.f32.xlu0 %v762
  %v764 = vpop.xlane.xlu0 %763
  %v765 = vsel %vm746, %v708, 0.0
  %766 = vadd.xlane.f32.xlu0 %v765
  %v767 = vpop.xlane.xlu0 %766
  %v768 = vsel %vm746, %v711, 0.0
  %769 = vadd.xlane.f32.xlu0 %v768
  %v770 = vpop.xlane.xlu0 %769
  %v771 = vsel %vm746, %v716, 0.0
  %772 = vadd.xlane.f32.xlu0 %v771
  %v773 = vpop.xlane.xlu0 %772
  %v774 = vsel %vm746, %v719, 0.0
  %775 = vadd.xlane.f32.xlu0 %v774
  %v776 = vpop.xlane.xlu0 %775
  %v777 = vsel %vm746, %v724, 0.0
  %778 = vadd.xlane.f32.xlu0 %v777
  %v779 = vpop.xlane.xlu0 %778
  %v780 = vsel %vm746, %v727, 0.0
  %781 = vadd.xlane.f32.xlu0 %v780
  %v782 = vpop.xlane.xlu0 %781
  %v783 = vsel %vm746, %v732, 0.0
  %784 = vadd.xlane.f32.xlu0 %v783
  %v785 = vpop.xlane.xlu0 %784
  %v786 = vsel %vm746, %v735, 0.0
  %787 = vadd.xlane.f32.xlu0 %v786
  %v788 = vpop.xlane.xlu0 %787
  %v789 = vsel %vm746, %v740, 0.0
  %790 = vadd.xlane.f32.xlu0 %v789
  %v791 = vpop.xlane.xlu0 %790
  %v792 = vsel %vm746, %v743, 0.0
  %793 = vadd.xlane.f32.xlu0 %v792
  %v794 = vpop.xlane.xlu0 %793
  %v795 = vmul.f32 %v749, 0.020408163
  %v796 = vmul.f32 %v752, 0.020408163
  %v797 = vmul.f32 %v755, 0.020408163
  %v798 = vmul.f32 %v758, 0.020408163
  %v799 = vmul.f32 %v761, 0.020408163
  %v800 = vmul.f32 %v764, 0.020408163
  %v801 = vmul.f32 %v767, 0.020408163
  %v802 = vmul.f32 %v770, 0.020408163
  %v803 = vmul.f32 %v773, 0.020408163
  %v804 = vmul.f32 %v776, 0.020408163
  %v805 = vmul.f32 %v779, 0.020408163
  %v806 = vmul.f32 %v782, 0.020408163
  %v807 = vmul.f32 %v785, 0.020408163
  %v808 = vmul.f32 %v788, 0.020408163
  %v809 = vmul.f32 %v791, 0.020408163
  %v810 = vmul.f32 %v794, 0.020408163
  %v811 = vsub.f32 %v684, %v795
  %v812 = vsub.f32 %v687, %v796
  %v813 = vsub.f32 %v692, %v797
  %v814 = vsub.f32 %v695, %v798
  %v815 = vsub.f32 %v700, %v799
  %v816 = vsub.f32 %v703, %v800
  %v817 = vsub.f32 %v708, %v801
  %v818 = vsub.f32 %v711, %v802
  %v819 = vsub.f32 %v716, %v803
  %v820 = vsub.f32 %v719, %v804
  %v821 = vsub.f32 %v724, %v805
  %v822 = vsub.f32 %v727, %v806
  %v823 = vsub.f32 %v732, %v807
  %v824 = vsub.f32 %v735, %v808
  %v825 = vsub.f32 %v740, %v809
  %v826 = vsub.f32 %v743, %v810
  %v827 = vmul.f32 %v811, %v811
  %v828 = vmul.f32 %v812, %v812
  %v829 = vmul.f32 %v813, %v813
  %v830 = vmul.f32 %v814, %v814
  %v831 = vmul.f32 %v815, %v815
  %v832 = vmul.f32 %v816, %v816
  %v833 = vmul.f32 %v817, %v817
  %v834 = vmul.f32 %v818, %v818
  %v835 = vmul.f32 %v819, %v819
  %v836 = vmul.f32 %v820, %v820
  %v837 = vmul.f32 %v821, %v821
  %v838 = vmul.f32 %v822, %v822
  %v839 = vmul.f32 %v823, %v823
  %v840 = vmul.f32 %v824, %v824
  %v841 = vmul.f32 %v825, %v825
  %v842 = vmul.f32 %v826, %v826
  %v843 = vsel %vm746, %v827, 0.0
  %844 = vadd.xlane.f32.xlu0 %v843
  %v845 = vpop.xlane.xlu0 %844
  %v846 = vsel %vm746, %v828, 0.0
  %847 = vadd.xlane.f32.xlu0 %v846
  %v848 = vpop.xlane.xlu0 %847
  %v849 = vsel %vm746, %v829, 0.0
  %850 = vadd.xlane.f32.xlu0 %v849
  %v851 = vpop.xlane.xlu0 %850
  %v852 = vsel %vm746, %v830, 0.0
  %853 = vadd.xlane.f32.xlu0 %v852
  %v854 = vpop.xlane.xlu0 %853
  %v855 = vsel %vm746, %v831, 0.0
  %856 = vadd.xlane.f32.xlu0 %v855
  %v857 = vpop.xlane.xlu0 %856
  %v858 = vsel %vm746, %v832, 0.0
  %859 = vadd.xlane.f32.xlu0 %v858
  %v860 = vpop.xlane.xlu0 %859
  %v861 = vsel %vm746, %v833, 0.0
  %862 = vadd.xlane.f32.xlu0 %v861
  %v863 = vpop.xlane.xlu0 %862
  %v864 = vsel %vm746, %v834, 0.0
  %865 = vadd.xlane.f32.xlu0 %v864
  %v866 = vpop.xlane.xlu0 %865
  %v867 = vsel %vm746, %v835, 0.0
  %868 = vadd.xlane.f32.xlu0 %v867
  %v869 = vpop.xlane.xlu0 %868
  %v870 = vsel %vm746, %v836, 0.0
  %871 = vadd.xlane.f32.xlu0 %v870
  %v872 = vpop.xlane.xlu0 %871
  %v873 = vsel %vm746, %v837, 0.0
  %874 = vadd.xlane.f32.xlu0 %v873
  %v875 = vpop.xlane.xlu0 %874
  %v876 = vsel %vm746, %v838, 0.0
  %877 = vadd.xlane.f32.xlu0 %v876
  %v878 = vpop.xlane.xlu0 %877
  %v879 = vsel %vm746, %v839, 0.0
  %880 = vadd.xlane.f32.xlu0 %v879
  %v881 = vpop.xlane.xlu0 %880
  %v882 = vsel %vm746, %v840, 0.0
  %883 = vadd.xlane.f32.xlu0 %v882
  %v884 = vpop.xlane.xlu0 %883
  %v885 = vsel %vm746, %v841, 0.0
  %886 = vadd.xlane.f32.xlu0 %v885
  %v887 = vpop.xlane.xlu0 %886
  %v888 = vsel %vm746, %v842, 0.0
  %889 = vadd.xlane.f32.xlu0 %v888
  %v890 = vpop.xlane.xlu0 %889
  %v891 = vmul.f32 %v845, 0.020408163
  %v892 = vmul.f32 %v848, 0.020408163
  %v893 = vmul.f32 %v851, 0.020408163
  %v894 = vmul.f32 %v854, 0.020408163
  %v895 = vmul.f32 %v857, 0.020408163
  %v896 = vmul.f32 %v860, 0.020408163
  %v897 = vmul.f32 %v863, 0.020408163
  %v898 = vmul.f32 %v866, 0.020408163
  %v899 = vmul.f32 %v869, 0.020408163
  %v900 = vmul.f32 %v872, 0.020408163
  %v901 = vmul.f32 %v875, 0.020408163
  %v902 = vmul.f32 %v878, 0.020408163
  %v903 = vmul.f32 %v881, 0.020408163
  %v904 = vmul.f32 %v884, 0.020408163
  %v905 = vmul.f32 %v887, 0.020408163
  %v906 = vmul.f32 %v890, 0.020408163
  %v907 = vadd.f32 %v891, 1e-05
  %v908 = vadd.f32 %v892, 1e-05
  %v909 = vadd.f32 %v893, 1e-05
  %v910 = vadd.f32 %v894, 1e-05
  %v911 = vadd.f32 %v895, 1e-05
  %v912 = vadd.f32 %v896, 1e-05
  %v913 = vadd.f32 %v897, 1e-05
  %v914 = vadd.f32 %v898, 1e-05
  %v915 = vadd.f32 %v899, 1e-05
  %v916 = vadd.f32 %v900, 1e-05
  %v917 = vadd.f32 %v901, 1e-05
  %v918 = vadd.f32 %v902, 1e-05
  %v919 = vadd.f32 %v903, 1e-05
  %v920 = vadd.f32 %v904, 1e-05
  %v921 = vadd.f32 %v905, 1e-05
  %v922 = vadd.f32 %v906, 1e-05
  %v923 = vrsqrt.pop %v907
  %v924 = vrsqrt.pop %v908
  %v925 = vrsqrt.pop %v909
  %v926 = vrsqrt.pop %v910
  %v927 = vrsqrt.pop %v911
  %v928 = vrsqrt.pop %v912
  %v929 = vrsqrt.pop %v913
  %v930 = vrsqrt.pop %v914
  %v931 = vrsqrt.pop %v915
  %v932 = vrsqrt.pop %v916
  %v933 = vrsqrt.pop %v917
  %v934 = vrsqrt.pop %v918
  %v935 = vrsqrt.pop %v919
  %v936 = vrsqrt.pop %v920
  %v937 = vrsqrt.pop %v921
  %v938 = vrsqrt.pop %v922
  %v939 = vld [vmem:[%s2] sm:$0xff]
  %v940 = vld [vmem:[%s2 + $0x8] sm:$0xff]
  %v941 = vld [vmem:[%s2 + $0x10] sm:$0xff]
  %v942 = vld [vmem:[%s2 + $0x18] sm:$0xff]
  %v943 = vld [vmem:[%s2 + $0x20] sm:$0xff]
  %v944 = vld [vmem:[%s2 + $0x28] sm:$0xff]
  %v945 = vld [vmem:[%s2 + $0x30] sm:$0xff]
  %v946 = vld [vmem:[%s2 + $0x38] sm:$0xff]
  %v947 = vld [vmem:[%s2 + $0x40] sm:$0xff]
  %v948 = vld [vmem:[%s2 + $0x48] sm:$0xff]
  %v949 = vld [vmem:[%s2 + $0x50] sm:$0xff]
  %v950 = vld [vmem:[%s2 + $0x58] sm:$0xff]
  %v951 = vld [vmem:[%s2 + $0x60] sm:$0xff]
  %v952 = vld [vmem:[%s2 + $0x68] sm:$0xff]
  %v953 = vld [vmem:[%s2 + $0x70] sm:$0xff]
  %v954 = vld [vmem:[%s2 + $0x78] sm:$0xff]
  %v955 = vmul.f32 %v939, %v923
  %v956 = vmul.f32 %v940, %v924
  %v957 = vmul.f32 %v941, %v925
  %v958 = vmul.f32 %v942, %v926
  %v959 = vmul.f32 %v943, %v927
  %v960 = vmul.f32 %v944, %v928
  %v961 = vmul.f32 %v945, %v929
  %v962 = vmul.f32 %v946, %v930
  %v963 = vmul.f32 %v947, %v931
  %v964 = vmul.f32 %v948, %v932
  %v965 = vmul.f32 %v949, %v933
  %v966 = vmul.f32 %v950, %v934
  %v967 = vmul.f32 %v951, %v935
  %v968 = vmul.f32 %v952, %v936
  %v969 = vmul.f32 %v953, %v937
  %v970 = vmul.f32 %v954, %v938
  %972 = vset.pattern.permute.xlu0 0
  %973 = vperm.xlu0 %972, %v955
  %v974 = vpop.permute.xlu0 %973
  %977 = vset.pattern.permute.xlu0 0
  %978 = vperm.xlu0 %977, %v956
  %v979 = vpop.permute.xlu0 %978
  %982 = vset.pattern.permute.xlu0 0
  %983 = vperm.xlu0 %982, %v957
  %v984 = vpop.permute.xlu0 %983
  %987 = vset.pattern.permute.xlu0 0
  %988 = vperm.xlu0 %987, %v958
  %v989 = vpop.permute.xlu0 %988
  %992 = vset.pattern.permute.xlu0 0
  %993 = vperm.xlu0 %992, %v959
  %v994 = vpop.permute.xlu0 %993
  %997 = vset.pattern.permute.xlu0 0
  %998 = vperm.xlu0 %997, %v960
  %v999 = vpop.permute.xlu0 %998
  %1002 = vset.pattern.permute.xlu0 0
  %1003 = vperm.xlu0 %1002, %v961
  %v1004 = vpop.permute.xlu0 %1003
  %1007 = vset.pattern.permute.xlu0 0
  %1008 = vperm.xlu0 %1007, %v962
  %v1009 = vpop.permute.xlu0 %1008
  %1012 = vset.pattern.permute.xlu0 0
  %1013 = vperm.xlu0 %1012, %v963
  %v1014 = vpop.permute.xlu0 %1013
  %1017 = vset.pattern.permute.xlu0 0
  %1018 = vperm.xlu0 %1017, %v964
  %v1019 = vpop.permute.xlu0 %1018
  %1022 = vset.pattern.permute.xlu0 0
  %1023 = vperm.xlu0 %1022, %v965
  %v1024 = vpop.permute.xlu0 %1023
  %1027 = vset.pattern.permute.xlu0 0
  %1028 = vperm.xlu0 %1027, %v966
  %v1029 = vpop.permute.xlu0 %1028
  %1032 = vset.pattern.permute.xlu0 0
  %1033 = vperm.xlu0 %1032, %v967
  %v1034 = vpop.permute.xlu0 %1033
  %1037 = vset.pattern.permute.xlu0 0
  %1038 = vperm.xlu0 %1037, %v968
  %v1039 = vpop.permute.xlu0 %1038
  %1042 = vset.pattern.permute.xlu0 0
  %1043 = vperm.xlu0 %1042, %v969
  %v1044 = vpop.permute.xlu0 %1043
  %1047 = vset.pattern.permute.xlu0 0
  %1048 = vperm.xlu0 %1047, %v970
  %v1049 = vpop.permute.xlu0 %1048
  %v1051 = vmul.f32 %v811, %v974
  %v1052 = vmul.f32 %v812, %v979
  %v1053 = vmul.f32 %v813, %v984
  %v1054 = vmul.f32 %v814, %v989
  %v1055 = vmul.f32 %v815, %v994
  %v1056 = vmul.f32 %v816, %v999
  %v1057 = vmul.f32 %v817, %v1004
  %v1058 = vmul.f32 %v818, %v1009
  %v1059 = vmul.f32 %v819, %v1014
  %v1060 = vmul.f32 %v820, %v1019
  %v1061 = vmul.f32 %v821, %v1024
  %v1062 = vmul.f32 %v822, %v1029
  %v1063 = vmul.f32 %v823, %v1034
  %v1064 = vmul.f32 %v824, %v1039
  %v1065 = vmul.f32 %v825, %v1044
  %v1066 = vmul.f32 %v826, %v1049
  %v1067 = vld [vmem:[%s3] sm:$0xff]
  %v1068 = vld [vmem:[%s3 + $0x8] sm:$0xff]
  %v1069 = vld [vmem:[%s3 + $0x10] sm:$0xff]
  %v1070 = vld [vmem:[%s3 + $0x18] sm:$0xff]
  %v1071 = vld [vmem:[%s3 + $0x20] sm:$0xff]
  %v1072 = vld [vmem:[%s3 + $0x28] sm:$0xff]
  %v1073 = vld [vmem:[%s3 + $0x30] sm:$0xff]
  %v1074 = vld [vmem:[%s3 + $0x38] sm:$0xff]
  %v1075 = vld [vmem:[%s3 + $0x40] sm:$0xff]
  %v1076 = vld [vmem:[%s3 + $0x48] sm:$0xff]
  %v1077 = vld [vmem:[%s3 + $0x50] sm:$0xff]
  %v1078 = vld [vmem:[%s3 + $0x58] sm:$0xff]
  %v1079 = vld [vmem:[%s3 + $0x60] sm:$0xff]
  %v1080 = vld [vmem:[%s3 + $0x68] sm:$0xff]
  %v1081 = vld [vmem:[%s3 + $0x70] sm:$0xff]
  %v1082 = vld [vmem:[%s3 + $0x78] sm:$0xff]
  %1084 = vset.pattern.permute.xlu0 0
  %1085 = vperm.xlu0 %1084, %v1067
  %v1086 = vpop.permute.xlu0 %1085
  %1089 = vset.pattern.permute.xlu0 0
  %1090 = vperm.xlu0 %1089, %v1068
  %v1091 = vpop.permute.xlu0 %1090
  %1094 = vset.pattern.permute.xlu0 0
  %1095 = vperm.xlu0 %1094, %v1069
  %v1096 = vpop.permute.xlu0 %1095
  %1099 = vset.pattern.permute.xlu0 0
  %1100 = vperm.xlu0 %1099, %v1070
  %v1101 = vpop.permute.xlu0 %1100
  %1104 = vset.pattern.permute.xlu0 0
  %1105 = vperm.xlu0 %1104, %v1071
  %v1106 = vpop.permute.xlu0 %1105
  %1109 = vset.pattern.permute.xlu0 0
  %1110 = vperm.xlu0 %1109, %v1072
  %v1111 = vpop.permute.xlu0 %1110
  %1114 = vset.pattern.permute.xlu0 0
  %1115 = vperm.xlu0 %1114, %v1073
  %v1116 = vpop.permute.xlu0 %1115
  %1119 = vset.pattern.permute.xlu0 0
  %1120 = vperm.xlu0 %1119, %v1074
  %v1121 = vpop.permute.xlu0 %1120
  %1124 = vset.pattern.permute.xlu0 0
  %1125 = vperm.xlu0 %1124, %v1075
  %v1126 = vpop.permute.xlu0 %1125
  %1129 = vset.pattern.permute.xlu0 0
  %1130 = vperm.xlu0 %1129, %v1076
  %v1131 = vpop.permute.xlu0 %1130
  %1134 = vset.pattern.permute.xlu0 0
  %1135 = vperm.xlu0 %1134, %v1077
  %v1136 = vpop.permute.xlu0 %1135
  %1139 = vset.pattern.permute.xlu0 0
  %1140 = vperm.xlu0 %1139, %v1078
  %v1141 = vpop.permute.xlu0 %1140
  %1144 = vset.pattern.permute.xlu0 0
  %1145 = vperm.xlu0 %1144, %v1079
  %v1146 = vpop.permute.xlu0 %1145
  %1149 = vset.pattern.permute.xlu0 0
  %1150 = vperm.xlu0 %1149, %v1080
  %v1151 = vpop.permute.xlu0 %1150
  %1154 = vset.pattern.permute.xlu0 0
  %1155 = vperm.xlu0 %1154, %v1081
  %v1156 = vpop.permute.xlu0 %1155
  %1159 = vset.pattern.permute.xlu0 0
  %1160 = vperm.xlu0 %1159, %v1082
  %v1161 = vpop.permute.xlu0 %1160
  %v1163 = vadd.f32 %v1051, %v1086
  %v1164 = vadd.f32 %v1052, %v1091
  %v1165 = vadd.f32 %v1053, %v1096
  %v1166 = vadd.f32 %v1054, %v1101
  %v1167 = vadd.f32 %v1055, %v1106
  %v1168 = vadd.f32 %v1056, %v1111
  %v1169 = vadd.f32 %v1057, %v1116
  %v1170 = vadd.f32 %v1058, %v1121
  %v1171 = vadd.f32 %v1059, %v1126
  %v1172 = vadd.f32 %v1060, %v1131
  %v1173 = vadd.f32 %v1061, %v1136
  %v1174 = vadd.f32 %v1062, %v1141
  %v1175 = vadd.f32 %v1063, %v1146
  %v1176 = vadd.f32 %v1064, %v1151
  %v1177 = vadd.f32 %v1065, %v1156
  %v1178 = vadd.f32 %v1066, %v1161
  %1179 = vst.msk [vmem:[%s4] sm:$0xff] %vm746, %v1163
  %1180 = vst.msk [vmem:[%s4 + $0x8] sm:$0xff] %vm746, %v1164
  %1181 = vst.msk [vmem:[%s4 + $0x10] sm:$0xff] %vm746, %v1165
  %1182 = vst.msk [vmem:[%s4 + $0x18] sm:$0xff] %vm746, %v1166
  %1183 = vst.msk [vmem:[%s4 + $0x20] sm:$0xff] %vm746, %v1167
  %1184 = vst.msk [vmem:[%s4 + $0x28] sm:$0xff] %vm746, %v1168
  %1185 = vst.msk [vmem:[%s4 + $0x30] sm:$0xff] %vm746, %v1169
  %1186 = vst.msk [vmem:[%s4 + $0x38] sm:$0xff] %vm746, %v1170
  %1187 = vst.msk [vmem:[%s4 + $0x40] sm:$0xff] %vm746, %v1171
  %1188 = vst.msk [vmem:[%s4 + $0x48] sm:$0xff] %vm746, %v1172
  %1189 = vst.msk [vmem:[%s4 + $0x50] sm:$0xff] %vm746, %v1173
  %1190 = vst.msk [vmem:[%s4 + $0x58] sm:$0xff] %vm746, %v1174
  %1191 = vst.msk [vmem:[%s4 + $0x60] sm:$0xff] %vm746, %v1175
  %1192 = vst.msk [vmem:[%s4 + $0x68] sm:$0xff] %vm746, %v1176
  %1193 = vst.msk [vmem:[%s4 + $0x70] sm:$0xff] %vm746, %v1177
  %1194 = vst.msk [vmem:[%s4 + $0x78] sm:$0xff] %vm746, %v1178
  // Predicated region
  $region18: #{tpu_custom_call.1} parent=0 // pred_check
    _
  $region19: #{tpu_custom_call.1} parent=0 // pred_check_branch
    %1196 = sbr.rel (0) target = $region21
  $region20: #{tpu_custom_call.1} parent=0 // pred_region
    _
  $region21: #{tpu_custom_call.1} parent=0 // pred_fallthru
    _
  // Predicated region
  $region22: #{tpu_custom_call.1} parent=0 // pred_check
    _
  $region23: #{tpu_custom_call.1} parent=0 // pred_check_branch
    %1198 = sbr.rel (0) target = $region25
  $region24: #{tpu_custom_call.1} parent=0 // pred_region
    _
  $region25: #{tpu_custom_call.1} parent=0 // pred_fallthru
    _

</llo_original>
